<compile_context>
chip_gen: v7x
topology: tpu7x:2x2x1
jax: 0.10.0
libtpu: 0.0.40
codegen_flags: <defaults>
</compile_context>

<pallas_src>
import functools

import jax
import jax.numpy as jnp
from jax import lax
from jax.experimental import pallas as pl
from jax.experimental.pallas import tpu as pltpu

LN_EPS = 1e-5    # PyTorch nn.LayerNorm default eps
AGG_EPS = 1e-6   # epsilon in the gated-mean denominator


def _round_up(x, m):
    return ((x + m - 1) // m) * m


def _layer_norm(x, gamma, beta):
    mu = jnp.mean(x, axis=-1, keepdims=True)
    var = jnp.mean((x - mu) * (x - mu), axis=-1, keepdims=True)
    return (x - mu) * lax.rsqrt(var + LN_EPS) * gamma + beta


# --------------------------------------------------------------------------------------
# Kernel A: fused node linears.  h_blk @ [W_B1|W_A2|W_B2|W_A3|W_A1] -> single lane-dense slab.
# --------------------------------------------------------------------------------------
def node_linear_kernel(h_ref, wcat_ref, bcat_ref, slab_ref):
    slab_ref[...] = (jnp.dot(h_ref[...], wcat_ref[...],
                             preferred_element_type=jnp.float32) + bcat_ref[...])


# --------------------------------------------------------------------------------------
# Kernel B: edge update + scatter-accumulate.
#   grid = (2 [core-parallel], E blocks [arbitrary]); node axis blocked INSIDE the kernel.
# --------------------------------------------------------------------------------------
def edge_kernel(src_col_ref, dst_col_ref, src_row_ref, dst_row_ref, e_ref,
                slab_ref, w3_ref, b3_ref, ge_ref, be_ref,
                e_out_ref, acc_ref, *, C, TN, E_valid, mxu_dtype):
    TE = e_ref.shape[0]
    n_pad = slab_ref.shape[0]
    n_chunks = n_pad // TN
    unroll = n_chunks <= 8

    ci = pl.program_id(0)        # core-split index (v7x megacore)
    ei = pl.program_id(1)        # edge-block index within this core's half

    @pl.when(ei == 0)
    def _():
        acc_ref[...] = jnp.zeros_like(acc_ref)

    e_blk = e_ref[...]                                   # [TE, C] f32
    src_c = src_col_ref[...]                             # [TE, 1] int32
    dst_c = dst_col_ref[...]                             # [TE, 1] int32
    src_r = src_row_ref[...]                             # [1, TE] int32
    dst_r = dst_row_ref[...]                             # [1, TE] int32

    # ---- gather phase: loop over node chunks, accumulate B1h[u]|A2h[u] and B2h[v]|A3h[v] ----
    col_iota = lax.broadcasted_iota(jnp.int32, (TE, TN), 1)   # hoisted out of the loop

    def gather_body(j, carry):
        g_src, g_dst = carry
        nst = pl.multiple_of(j * TN, TN)
        chunk = slab_ref[pl.ds(nst, TN), :]                    # [TN, 5C] f32
        src_part = chunk[:, :2 * C].astype(mxu_dtype)          # [B1h | A2h]
        dst_part = chunk[:, 2 * C:4 * C].astype(mxu_dtype)     # [B2h | A3h]
        nid = col_iota + nst
        oh_s = (nid == src_c).astype(mxu_dtype)                # [TE, TN] exact 0/1
        oh_d = (nid == dst_c).astype(mxu_dtype)
        g_src = g_src + jnp.dot(oh_s, src_part, preferred_element_type=jnp.float32)
        g_dst = g_dst + jnp.dot(oh_d, dst_part, preferred_element_type=jnp.float32)
        return g_src, g_dst

    g0 = (jnp.zeros((TE, 2 * C), jnp.float32), jnp.zeros((TE, 2 * C), jnp.float32))
    g_src, g_dst = lax.fori_loop(0, n_chunks, gather_body, g0, unroll=unroll)

    b1h_u, a2h_u = g_src[:, :C], g_src[:, C:]
    b2h_v, a3h_v = g_dst[:, :C], g_dst[:, C:]

    b3e = jnp.dot(e_blk, w3_ref[...], preferred_element_type=jnp.float32) + b3_ref[...]

    # Edge update: e_ji = relu(LN(B1h[u] + B2h[v] + B3e)) + e_in (residual).
    # Reverse-graph edge e_ik = B2h[v] + B1h[u] + B3e is numerically identical
    # (commutative add, stateless LayerNorm) -> sigma_b == sigma_f.
    e_ji = jax.nn.relu(_layer_norm(b1h_u + b2h_v + b3e, ge_ref[...], be_ref[...])) + e_blk
    sigma = jax.nn.sigmoid(e_ji)
    e_out_ref[...] = e_ji

    # Padded edges must not contribute to the scatter.
    lane = lax.broadcasted_iota(jnp.int32, (1, TE), 1)
    glob_blk = ci * pl.num_programs(1) + ei
    valid = (glob_blk * TE + lane) < E_valid                   # [1, TE] bool

    pay_f = jnp.concatenate([a2h_u * sigma, sigma], axis=-1).astype(mxu_dtype)  # [TE, 2C]
    pay_b = jnp.concatenate([a3h_v * sigma, sigma], axis=-1).astype(mxu_dtype)  # [TE, 2C]

    # ---- scatter phase: loop over node chunks, accumulate into this core's acc slice ----
    row_iota = lax.broadcasted_iota(jnp.int32, (TN, TE), 0)    # hoisted out of the loop

    def scatter_body(j, carry):
        nst = pl.multiple_of(j * TN, TN)
        nid = row_iota + nst
        oh_d_t = ((nid == dst_r) & valid).astype(mxu_dtype)    # [TN, TE]
        oh_s_t = ((nid == src_r) & valid).astype(mxu_dtype)    # [TN, TE]
        contrib_f = jnp.dot(oh_d_t, pay_f, preferred_element_type=jnp.float32)  # [TN, 2C]
        contrib_b = jnp.dot(oh_s_t, pay_b, preferred_element_type=jnp.float32)  # [TN, 2C]
        acc_ref[pl.ds(nst, TN), :] += jnp.concatenate([contrib_f, contrib_b], axis=-1)
        return carry

    lax.fori_loop(0, n_chunks, scatter_body, 0, unroll=unroll)


# --------------------------------------------------------------------------------------
# Kernel C: node finalize (sum core partials, gated mean, LayerNorm, relu, residual).
# --------------------------------------------------------------------------------------
def node_update_kernel(acc_ref, slab_ref, h_ref, gh_ref, bh_ref, h_out_ref, *, C):
    acc = acc_ref[...]
    acc = acc[0] + acc[1]                                      # sum the two core partials
    # exact division kept (approx reciprocal was too coarse for the 1e-3 check)
    h_fwd = acc[:, 0:C] / (acc[:, C:2 * C] + AGG_EPS)
    h_bwd = acc[:, 2 * C:3 * C] / (acc[:, 3 * C:4 * C] + AGG_EPS)
    a1h = slab_ref[...][:, 4 * C:5 * C]
    h_new = a1h + h_fwd + h_bwd
    h_out_ref[...] = jax.nn.relu(_layer_norm(h_new, gh_ref[...], bh_ref[...])) + h_ref[...]
    # F.dropout with p=0.0 (module default dropout=None) is a no-op.


# --------------------------------------------------------------------------------------
# Wrapper
# --------------------------------------------------------------------------------------
def sym_gated_gcn(h, e, src, dst, w, b, gamma_h, beta_h, gamma_e, beta_e,
                  *, tile_n=512, tile_e=256, mxu_dtype=jnp.bfloat16):
    """w: [6, C, C] (A1, A2, A3, B1, B2, B3), b: [6, 1, C]; h: [N, C]; e, src, dst: [E, ...].

    tile_e default 256 is v7x-safe; raise to 512-1024 on v5e/v6e (128 MiB VMEM).
    mxu_dtype=jnp.bfloat16 runs the one-hot gather/scatter matmuls at bf16 MXU rate
    (f32 accumulation); pass jnp.float32 for bit-accurate semantics.
    """
    N, C = h.shape
    E = e.shape[0]

    # node tile (also the inner node-chunk size of the edge kernel) and edge tile
    tn = _round_up(min(tile_n, _round_up(N, 8)), 8)
    te = _round_up(min(tile_e, _round_up(E, 8)), 128)
    n_pad = _round_up(N, tn)
    e_pad = _round_up(E, 2 * te)          # 2 = leading core-parallel grid axis
    grid_n = n_pad // tn
    geh = e_pad // (2 * te)               # edge blocks per core

    h_p = jnp.zeros((n_pad, C), jnp.float32).at[:N].set(h)
    e_p = jnp.zeros((e_pad, C), jnp.float32).at[:E].set(e)
    src_p = jnp.zeros((e_pad,), jnp.int32).at[:E].set(src.astype(jnp.int32))
    dst_p = jnp.zeros((e_pad,), jnp.int32).at[:E].set(dst.astype(jnp.int32))
    src_col, src_row = src_p.reshape(e_pad, 1), src_p.reshape(1, e_pad)
    dst_col, dst_row = dst_p.reshape(e_pad, 1), dst_p.reshape(1, e_pad)

    # fused node-side weights, column order [B1 | A2 | B2 | A3 | A1]
    w_cat = jnp.concatenate([w[3], w[1], w[4], w[2], w[0]], axis=1)   # [C, 5C]
    b_cat = jnp.concatenate([b[3], b[1], b[4], b[2], b[0]], axis=1)   # [1, 5C]

    # ---- Kernel A: fused node linears, single lane-dense [n_pad, 5C] slab ----
    slab = pl.pallas_call(
        node_linear_kernel,
        out_shape=jax.ShapeDtypeStruct((n_pad, 5 * C), jnp.float32),
        grid=(grid_n,),
        in_specs=[pl.BlockSpec((tn, C), lambda i: (i, 0)),
                  pl.BlockSpec((C, 5 * C), lambda i: (0, 0)),
                  pl.BlockSpec((1, 5 * C), lambda i: (0, 0))],
        out_specs=pl.BlockSpec((tn, 5 * C), lambda i: (i, 0)),
        compiler_params=pltpu.CompilerParams(dimension_semantics=("parallel",)),
    )(h_p, w_cat, b_cat)

    # ---- Kernel B: edge update + scatter accumulate (core-parallel x arbitrary) ----
    e_out_p, acc = pl.pallas_call(
        functools.partial(edge_kernel, C=C, TN=tn, E_valid=E, mxu_dtype=mxu_dtype),
        out_shape=(jax.ShapeDtypeStruct((e_pad, C), jnp.float32),
                   jax.ShapeDtypeStruct((2, n_pad, 4 * C), jnp.float32)),
        grid=(2, geh),
        in_specs=[pl.BlockSpec((te, 1), lambda c, i: (c * geh + i, 0)),
                  pl.BlockSpec((te, 1), lambda c, i: (c * geh + i, 0)),
                  pl.BlockSpec((1, te), lambda c, i: (0, c * geh + i)),
                  pl.BlockSpec((1, te), lambda c, i: (0, c * geh + i)),
                  pl.BlockSpec((te, C), lambda c, i: (c * geh + i, 0)),
                  pl.BlockSpec((n_pad, 5 * C), lambda c, i: (0, 0)),
                  pl.BlockSpec((C, C), lambda c, i: (0, 0)),
                  pl.BlockSpec((1, C), lambda c, i: (0, 0)),
                  pl.BlockSpec((1, C), lambda c, i: (0, 0)),
                  pl.BlockSpec((1, C), lambda c, i: (0, 0))],
        out_specs=(pl.BlockSpec((te, C), lambda c, i: (c * geh + i, 0)),
                   pl.BlockSpec((None, n_pad, 4 * C), lambda c, i: (c, 0, 0))),
        compiler_params=pltpu.CompilerParams(
            dimension_semantics=("parallel", "arbitrary"),
            vmem_limit_bytes=32 * 1024 * 1024),
    )(src_col, dst_col, src_row, dst_row, e_p, slab, w[5], b[5], gamma_e, beta_e)

    # ---- Kernel C: node finalize (sums the two core partials), tiled over N ----
    h_out_p = pl.pallas_call(
        functools.partial(node_update_kernel, C=C),
        out_shape=jax.ShapeDtypeStruct((n_pad, C), jnp.float32),
        grid=(grid_n,),
        in_specs=[pl.BlockSpec((2, tn, 4 * C), lambda i: (0, i, 0)),
                  pl.BlockSpec((tn, 5 * C), lambda i: (i, 0)),
                  pl.BlockSpec((tn, C), lambda i: (i, 0)),
                  pl.BlockSpec((1, C), lambda i: (0, 0)),
                  pl.BlockSpec((1, C), lambda i: (0, 0))],
        out_specs=pl.BlockSpec((tn, C), lambda i: (i, 0)),
        compiler_params=pltpu.CompilerParams(dimension_semantics=("parallel",)),
    )(acc, slab, h_p, gamma_h, beta_h)

    return h_out_p[:N], e_out_p[:E]


# --------------------------------------------------------------------------------------
# Pure-JAX reference (mirrors the DGL semantics with explicit edge lists)
# --------------------------------------------------------------------------------------
def reference(h, e, src, dst, w, b, gamma_h, beta_h, gamma_e, beta_e):
    N, C = h.shape

    def lin(i, x):
        return x @ w[i] + b[i, 0]

    a1h, a2h, a3h, b1h, b2h = (lin(i, h) for i in range(5))
    b3e = lin(5, e)

    def ln(x, g, bb):
        mu = x.mean(-1, keepdims=True)
        var = ((x - mu) ** 2).mean(-1, keepdims=True)
        return (x - mu) * lax.rsqrt(var + LN_EPS) * g + bb

    e_ji = jax.nn.relu(ln(b1h[src] + b2h[dst] + b3e, gamma_e, beta_e)) + e
    sigma = jax.nn.sigmoid(e_ji)

    seg = lambda vals, idx: jax.ops.segment_sum(vals, idx, num_segments=N)
    h_fwd = seg(a2h[src] * sigma, dst) / (seg(sigma, dst) + AGG_EPS)
    h_bwd = seg(a3h[dst] * sigma, src) / (seg(sigma, src) + AGG_EPS)

    h_new = jax.nn.relu(ln(a1h + h_fwd + h_bwd, gamma_h, beta_h)) + h
    return h_new, e_ji


if __name__ == "__main__":
    # small, but big enough (with tile_n=64, tile_e=128) to exercise the 2-core edge grid,
    # multi-block node grids, multi-chunk inner node loops, and edge/node padding.
    N, E, C = 200, 520, 32
    key = jax.random.PRNGKey(0)
    k_h, k_e, k_src, k_dst, k_w, k_b = jax.random.split(key, 6)

    h = jax.random.normal(k_h, (N, C), jnp.float32)
    e = jax.random.normal(k_e, (E, C), jnp.float32)
    src = jax.random.randint(k_src, (E,), 0, N, dtype=jnp.int32)
    dst = jax.random.randint(k_dst, (E,), 0, N, dtype=jnp.int32)

    bound = 1.0 / (C ** 0.5)
    w = jax.random.uniform(k_w, (6, C, C), jnp.float32, -bound, bound)  # A1,A2,A3,B1,B2,B3
    b = jax.random.uniform(k_b, (6, 1, C), jnp.float32, -bound, bound)
    gamma_h = jnp.ones((1, C), jnp.float32)
    beta_h = jnp.zeros((1, C), jnp.float32)
    gamma_e = jnp.ones((1, C), jnp.float32)
    beta_e = jnp.zeros((1, C), jnp.float32)

    args = (h, e, src, dst, w, b, gamma_h, beta_h, gamma_e, beta_e)
    h_expect, e_expect = reference(*args)

    # Strict semantics check: f32 MXU path.
    h32, e32 = sym_gated_gcn(*args, tile_n=64, tile_e=128, mxu_dtype=jnp.float32)
    jax.block_until_ready((h32, e32))
    assert jnp.allclose(h32, h_expect, atol=1e-3, rtol=1e-3), \
        float(jnp.max(jnp.abs(h32 - h_expect)))
    assert jnp.allclose(e32, e_expect, atol=1e-3, rtol=1e-3), \
        float(jnp.max(jnp.abs(e32 - e_expect)))

    # Performance default: bf16 one-hot gather/scatter matmuls (f32 accumulation).
    # bf16 operand rounding (~2^-9 relative) loosens the achievable tolerance.
    hbf, ebf = sym_gated_gcn(*args, tile_n=64, tile_e=128)
    jax.block_until_ready((hbf, ebf))
    assert jnp.allclose(hbf, h_expect, atol=5e-2, rtol=5e-2), \
        float(jnp.max(jnp.abs(hbf - h_expect)))
    assert jnp.allclose(ebf, e_expect, atol=5e-2, rtol=5e-2), \
        float(jnp.max(jnp.abs(ebf - e_expect)))

    print("KERNEL_OK")
</pallas_src>

<mosaic_0001>
module attributes {stable_mosaic.version = 11 : i64} {
  func.func @node_linear_kernel(%arg0: i32, %arg1: memref<64x32xf32, #tpu.memory_space<vmem>>, %arg2: memref<32x160xf32, #tpu.memory_space<vmem>>, %arg3: memref<1x160xf32, #tpu.memory_space<vmem>>, %arg4: memref<64x160xf32, #tpu.memory_space<vmem>>) attributes {dimension_semantics = [#tpu.dimension_semantics<parallel>], iteration_bounds = array<i64: 4>, scalar_prefetch = 0 : i64, scratch_operands = 0 : i64, tpu.core_type = #tpu.core_type<tc>, window_params = [{transform_indices = @transform_0, window_bounds = array<i64: 64, 32>}, {pipeline_mode = #tpu.pipeline_mode<synchronous>, transform_indices = @transform_1, window_bounds = array<i64: 32, 160>}, {pipeline_mode = #tpu.pipeline_mode<synchronous>, transform_indices = @transform_2, window_bounds = array<i64: 1, 160>}, {transform_indices = @transform_3, window_bounds = array<i64: 64, 160>}]} {
    %c0 = arith.constant 0 : index
    %c0_0 = arith.constant 0 : index
    %0 = vector.load %arg1[%c0, %c0_0] : memref<64x32xf32, #tpu.memory_space<vmem>>, vector<64x32xf32>
    %c0_1 = arith.constant 0 : index
    %c0_2 = arith.constant 0 : index
    %1 = vector.load %arg2[%c0_1, %c0_2] : memref<32x160xf32, #tpu.memory_space<vmem>>, vector<32x160xf32>
    %cst = arith.constant dense<0.000000e+00> : vector<64x160xf32>
    %2 = tpu.matmul %0, %1, %cst {dimension_numbers = #tpu.dot_dimension_numbers<[1], [0], [0], [1], [0, 0, 1, 1], [], []>} : vector<64x32xf32>, vector<32x160xf32>, vector<64x160xf32> -> vector<64x160xf32>
    %c0_3 = arith.constant 0 : index
    %c0_4 = arith.constant 0 : index
    %3 = vector.load %arg3[%c0_3, %c0_4] : memref<1x160xf32, #tpu.memory_space<vmem>>, vector<1x160xf32>
    %4 = vector.broadcast %3 : vector<1x160xf32> to vector<64x160xf32>
    %5 = arith.addf %2, %4 : vector<64x160xf32>
    %c0_5 = arith.constant 0 : index
    %c0_6 = arith.constant 0 : index
    %6 = vector.load %arg4[%c0_5, %c0_6] : memref<64x160xf32, #tpu.memory_space<vmem>>, vector<64x160xf32>
    tpu.vector_store %arg4[%c0_5, %c0_6], %5 {strides = array<i32>} : memref<64x160xf32, #tpu.memory_space<vmem>>, vector<64x160xf32>,
    return
  }
  func.func @transform_0(%arg0: i32) -> (i32, i32) {
    %c0_i32 = arith.constant 0 : i32
    %c0_i32_0 = arith.constant 0 : i32
    return %arg0, %c0_i32 : i32, i32
  }
  func.func @transform_1(%arg0: i32) -> (i32, i32) {
    %c0_i32 = arith.constant 0 : i32
    %c0_i32_0 = arith.constant 0 : i32
    %c0_i32_1 = arith.constant 0 : i32
    return %c0_i32, %c0_i32_0 : i32, i32
  }
  func.func @transform_2(%arg0: i32) -> (i32, i32) {
    %c0_i32 = arith.constant 0 : i32
    %c0_i32_0 = arith.constant 0 : i32
    %c0_i32_1 = arith.constant 0 : i32
    return %c0_i32, %c0_i32_0 : i32, i32
  }
  func.func @transform_3(%arg0: i32) -> (i32, i32) {
    %c0_i32 = arith.constant 0 : i32
    %c0_i32_0 = arith.constant 0 : i32
    return %arg0, %c0_i32 : i32, i32
  }
}

</mosaic_0001>

<llo_original>
// kernel: tpu_custom_call.1
$region0: #{tpu_custom_call.1}
  #allocation0 [shape = 'u32[]', space=smem, size = 0x4, offset = 0x4, fixed_abs, tag = 'smem constant byte address 0x4 - core index']
  #allocation1 [shape = 'u32[144,128]{1,0:T(1,128)}', space=vmem, size = 0x12000, scoped, tag = 'internal scratch']
  %s0 = inlined_call_operand.vmem [shape: f32[256,32], index: 0, kind: input, shape index: {}]
  %s1 = inlined_call_operand.vmem [shape: f32[32,160], index: 1, kind: input, shape index: {}]
  %s2 = inlined_call_operand.vmem [shape: f32[1,160], index: 2, kind: input, shape index: {}]
  %s3 = inlined_call_operand.vmem [shape: f32[256,160], index: 3, kind: output, shape index: {}]
  %s4 = sld [smem:[#allocation0]]
  $region45: #{tpu_custom_call.1} parent=0
    _
  %s6 = ssub.s32 1, %s4
  %s7 = scalar_select 0, %s6, %s4
  loop: start=0, step=1, limit=6
  $region2: #{tpu_custom_call.1} parent=0 // loop_pre_header
    _
  $region3: #{tpu_custom_call.1} parent=0 // loop_header
    %s9 = sphi 0, %s13
    %p10 = scmp.ge.s32.totalorder %s9, 6
    %s19 = sphi 0, %s21
    %s22 = sphi 0, %s19
    %s23 = sphi 0, %s22
    %s39 = sphi 0, %s23
    %s43 = sphi 0, %s43
    %s45 = sphi 0, %s43
    %s46 = sphi 0, %s45
    %s60 = sphi 0, %s46
    %s64 = sphi 0, %s64
    %s66 = sphi 0, %s64
    %s67 = sphi 0, %s66
    %s81 = sphi 0, %s67
    %s87 = sphi 0, %s89
    %s90 = sphi 0, %s87
    %s91 = sphi 0, %s90
    %s107 = sphi 0, %s91
  $region4: #{tpu_custom_call.1} parent=0 // loop_header_branch
    %12 = sbr.rel (%p10) target = $region8
  $region5: #{tpu_custom_call.1} parent=0 // loop_body
    %s14 = ssub.s32 %s9, 1
    %s15 = ssub.s32 %s9, 2
    %s16 = sadd.s32 %s9, 1
    %s17 = ssub.s32 %s9, %s16
    %p18 = scmp.eq.s32.totalorder %s17, 0
    %s20 = sadd.s32 %s19, 1
    %s21 = scalar_select %p18, %s19, %s20
    %p24 = pneg %p18
    %p25 = scmp.eq.s32.totalorder %s9, 3
    %p26 = por %p24, %p25
    %p27 = scmp.ne.s32.totalorder %s19, %s22
    %p28 = scmp.eq.s32.totalorder %s9, 0
    %p29 = por %p27, %p28
    %p30 = scmp.ne.s32.totalorder %s19, %s22
    %p31 = scmp.eq.s32.totalorder %s14, 3
    %p32 = por %p30, %p31
    %p33 = scmp.ne.s32.totalorder %s22, %s23
    %p34 = scmp.eq.s32.totalorder %s14, 0
    %p35 = por %p33, %p34
    %p36 = scmp.ne.s32.totalorder %s22, %s23
    %p37 = scmp.eq.s32.totalorder %s15, 3
    %p38 = por %p36, %p37
    %p40 = scmp.ne.s32.totalorder %s23, %s39
    %p41 = scmp.eq.s32.totalorder %s15, 0
    %p42 = por %p40, %p41
    %s44 = sadd.s32 %s43, 1
    %p47 = scmp.eq.s32.totalorder %s9, 3
    %p48 = scmp.ne.s32.totalorder %s43, %s45
    %p49 = scmp.eq.s32.totalorder %s9, 0
    %p50 = por %p48, %p49
    %p51 = scmp.ne.s32.totalorder %s43, %s45
    %p52 = scmp.eq.s32.totalorder %s14, 3
    %p53 = por %p51, %p52
    %p54 = scmp.ne.s32.totalorder %s45, %s46
    %p55 = scmp.eq.s32.totalorder %s14, 0
    %p56 = por %p54, %p55
    %p57 = scmp.ne.s32.totalorder %s45, %s46
    %p58 = scmp.eq.s32.totalorder %s15, 3
    %p59 = por %p57, %p58
    %p61 = scmp.ne.s32.totalorder %s46, %s60
    %p62 = scmp.eq.s32.totalorder %s15, 0
    %p63 = por %p61, %p62
    %s65 = sadd.s32 %s64, 1
    %p68 = scmp.eq.s32.totalorder %s9, 3
    %p69 = scmp.ne.s32.totalorder %s64, %s66
    %p70 = scmp.eq.s32.totalorder %s9, 0
    %p71 = por %p69, %p70
    %p72 = scmp.ne.s32.totalorder %s64, %s66
    %p73 = scmp.eq.s32.totalorder %s14, 3
    %p74 = por %p72, %p73
    %p75 = scmp.ne.s32.totalorder %s66, %s67
    %p76 = scmp.eq.s32.totalorder %s14, 0
    %p77 = por %p75, %p76
    %p78 = scmp.ne.s32.totalorder %s66, %s67
    %p79 = scmp.eq.s32.totalorder %s15, 3
    %p80 = por %p78, %p79
    %p82 = scmp.ne.s32.totalorder %s67, %s81
    %p83 = scmp.eq.s32.totalorder %s15, 0
    %p84 = por %p82, %p83
    %s85 = ssub.s32 %s9, %s16
    %p86 = scmp.eq.s32.totalorder %s85, 0
    %s88 = sadd.s32 %s87, 1
    %s89 = scalar_select %p86, %s87, %s88
    %p92 = pneg %p86
    %p93 = scmp.eq.s32.totalorder %s9, 3
    %p94 = por %p92, %p93
    %p95 = scmp.ne.s32.totalorder %s87, %s90
    %p96 = scmp.eq.s32.totalorder %s9, 0
    %p97 = por %p95, %p96
    %p98 = scmp.ne.s32.totalorder %s87, %s90
    %p99 = scmp.eq.s32.totalorder %s14, 3
    %p100 = por %p98, %p99
    %p101 = scmp.ne.s32.totalorder %s90, %s91
    %p102 = scmp.eq.s32.totalorder %s14, 0
    %p103 = por %p101, %p102
    %p104 = scmp.ne.s32.totalorder %s90, %s91
    %p105 = scmp.eq.s32.totalorder %s15, 3
    %p106 = por %p104, %p105
    %p108 = scmp.ne.s32.totalorder %s91, %s107
    %p109 = scmp.eq.s32.totalorder %s15, 0
    %p110 = por %p108, %p109
    %p111 = scmp.le.s32.totalorder 1, %s9
    %p112 = scmp.lt.s32.totalorder %s9, 5
    %p113 = pnand %p111, %p112
    %p114 = pneg %p113
    // Predicated region
    $region9: #{tpu_custom_call.1} parent=5 // pred_check
      _
    $region10: #{tpu_custom_call.1} parent=5 // pred_check_branch
      %116 = sbr.rel (%p113) target = $region12
    $region11: #{tpu_custom_call.1} parent=5 // pred_region
      %s117 = ssub.s32 %s9, 1
      // Predicated region
      $region13: #{tpu_custom_call.1} parent=11 // pred_check
        %p118 = pneg %p56
      $region14: #{tpu_custom_call.1} parent=11 // pred_check_branch
        %120 = sbr.rel (%p118) target = $region16
      $region15: #{tpu_custom_call.1} parent=11 // pred_region
        _
      $region16: #{tpu_custom_call.1} parent=11 // pred_fallthru
        _
      // Predicated region
      $region17: #{tpu_custom_call.1} parent=11 // pred_check
        %p121 = pneg %p77
      $region18: #{tpu_custom_call.1} parent=11 // pred_check_branch
        %123 = sbr.rel (%p121) target = $region20
      $region19: #{tpu_custom_call.1} parent=11 // pred_region
        _
      $region20: #{tpu_custom_call.1} parent=11 // pred_fallthru
        _
    $region12: #{tpu_custom_call.1} parent=5 // pred_fallthru
      _
    %p124 = scmp.lt.s32.totalorder %s9, 4
    // Predicated region
    $region21: #{tpu_custom_call.1} parent=5 // pred_check
      %p125 = pneg %p124
    $region22: #{tpu_custom_call.1} parent=5 // pred_check_branch
      %127 = sbr.rel (%p125) target = $region24
    $region23: #{tpu_custom_call.1} parent=5 // pred_region
      // Predicated region
      $region25: #{tpu_custom_call.1} parent=23 // pred_check
        %p128 = pneg %p29
      $region26: #{tpu_custom_call.1} parent=23 // pred_check_branch
        %130 = sbr.rel (%p128) target = $region28
      $region27: #{tpu_custom_call.1} parent=23 // pred_region
        %s131 = smul.u32 8, %s9
        %p132 = scmp.lt.s32.totalorder %s131, 31
        %s133 = scalar_select %p132, %s131, 31
        %s134 = smul.addr %s133, 8
        %s135 = scalar_lea.vmem %s0, %s134
        %s136 = smul.u32 8, %s9
      $region28: #{tpu_custom_call.1} parent=23 // pred_fallthru
        _
    $region24: #{tpu_custom_call.1} parent=5 // pred_fallthru
      _
    %p137 = scmp.le.s32.totalorder 1, %s9
    %p138 = scmp.lt.s32.totalorder %s9, 5
    %p139 = pnand %p137, %p138
    %p140 = pneg %p139
    // Predicated region
    $region29: #{tpu_custom_call.1} parent=5 // pred_check
      _
    $region30: #{tpu_custom_call.1} parent=5 // pred_check_branch
      %142 = sbr.rel (%p139) target = $region32
    $region31: #{tpu_custom_call.1} parent=5 // pred_region
      %s143 = ssub.s32 %s9, 1
      %s144 = smul.u32 8, %s14
      %p145 = scmp.lt.s32.totalorder %s144, 31
      %s146 = scalar_select %p145, %s144, 31
      %s147 = smul.addr %s146, 8
      %s148 = scalar_lea.vmem %s0, %s147
      %p149 = pneg %p35
      %p150 = pneg %p32
      %p151 = pneg %p56
      %p152 = pneg %p53
      %p153 = pneg %p77
      %p154 = pneg %p74
      %p155 = pneg %p103
      %p156 = pneg %p100
      %s157 = smul.u32 8, %s14
      %p158 = scmp.lt.s32.totalorder %s157, 31
      %s159 = scalar_select %p158, %s157, 31
      %s160 = smul.addr %s159, 2
      %s161 = smul.addr %s160, 8
      %s162 = scalar_lea.vmem %s3, %s161
      %s163 = smul.u32 8, %s14
      %p164 = scmp.lt.s32.totalorder %s163, 31
      %s165 = scalar_select %p164, %s163, 31
      %s166 = smul.addr %s165, 8
      %s167 = scalar_lea.vmem %s0, %s166
      %s168 = smul.u32 8, %s14
      %s169 = smul.u32 8, %s14
      %p170 = scmp.lt.s32.totalorder %s169, 31
      %s171 = scalar_select %p170, %s169, 31
      %s172 = smul.addr %s171, 2
      %s173 = smul.addr %s172, 8
      %s174 = scalar_lea.vmem %s3, %s173
      %s175 = smul.u32 8, %s14
      %v176 = vld [vmem:[%s167] sm:$0xff]
      %v177 = vld [vmem:[%s167 + $0x8] sm:$0xff]
      %v178 = vld [vmem:[%s167 + $0x10] sm:$0xff]
      %v179 = vld [vmem:[%s167 + $0x18] sm:$0xff]
      %v180 = vld [vmem:[%s167 + $0x20] sm:$0xff]
      %v181 = vld [vmem:[%s167 + $0x28] sm:$0xff]
      %v182 = vld [vmem:[%s167 + $0x30] sm:$0xff]
      %v183 = vld [vmem:[%s167 + $0x38] sm:$0xff]
      %v184 = vld [vmem:[%s1] sm:$0xff]
      %v185 = vld [vmem:[%s1 + $0x8] sm:$0xff]
      %v186 = vld [vmem:[%s1 + $0x10] sm:$0xff]
      %v187 = vld [vmem:[%s1 + $0x18] sm:$0xff]
      %v188 = vld [vmem:[%s1 + $0x20] sm:$0xff]
      %v189 = vld [vmem:[%s1 + $0x28] sm:$0xff]
      %v190 = vld [vmem:[%s1 + $0x30] sm:$0xff]
      %v191 = vld [vmem:[%s1 + $0x38] sm:$0xff]
      %v192 = vld [vmem:[%s2] sm:$0x3]
      %v194 = vlaneseq
      %v195 = vshrl.u32 %v194, 7
      %v196 = vsub.s32 0, %v195
      %v197 = vrot.slane %v192, %v196
      %v198 = vlaneseq
      %v199 = vshrl.u32 %v198, 7
      %v200 = vsub.s32 1, %v199
      %v201 = vrot.slane %v192, %v200
      %vm204 = vcmask 261120
      %v206 = vsel %vm204, %v176, 0
      %v209 = vsel %vm204, %v177, 0
      %v212 = vsel %vm204, %v178, 0
      %v215 = vsel %vm204, %v179, 0
      %v218 = vsel %vm204, %v180, 0
      %v221 = vsel %vm204, %v181, 0
      %v224 = vsel %vm204, %v182, 0
      %v227 = vsel %vm204, %v183, 0
      %229 = vmatprep.subr.mxu0 %v185
      %230 = vmatpush1.msra.mxu0 %v184
      %231 = vmatprep.subr.mxu0 %v187
      %232 = vmatpush1.msra.mxu0 %v186
      %233 = vmatprep.subr.mxu0 %v189
      %234 = vmatpush1.msra.mxu0 %v188
      %235 = vmatprep.subr.mxu0 %v191
      %236 = vmatpush1.msra.mxu0 %v190
      %237 = vmatprep.subr.mxu0 0.0
      %238 = vmatpush1.msra.mxu0 0.0
      %239 = vmatprep.subr.mxu0 0.0
      %240 = vmatpush1.msra.mxu0 0.0
      %241 = vmatprep.subr.mxu0 0.0
      %242 = vmatpush1.msra.mxu0 0.0
      %243 = vmatprep.subr.mxu0 0.0
      %244 = vmatpush1.msra.mxu0 0.0
      %245 = vmatprep.subr.mxu0 0.0
      %246 = vmatpush1.msra.mxu0 0.0
      %247 = vmatprep.subr.mxu0 0.0
      %248 = vmatpush1.msra.mxu0 0.0
      %249 = vmatprep.subr.mxu0 0.0
      %250 = vmatpush1.msra.mxu0 0.0
      %251 = vmatprep.subr.mxu0 0.0
      %252 = vmatpush1.msra.mxu0 0.0
      %253 = vmatprep.subr.mxu0 0.0
      %254 = vmatpush1.msra.mxu0 0.0
      %255 = vmatprep.subr.mxu0 0.0
      %256 = vmatpush1.msra.mxu0 0.0
      %257 = vmatprep.subr.mxu0 0.0
      %258 = vmatpush1.msra.mxu0 0.0
      %259 = vmatprep.subr.mxu0 0.0
      %260 = vmatpush1.msra.mxu0 0.0
      %261 = vmatprep.subr.mxu0 0.0
      %262 = vmatpush1.msra.mxu0 0.0
      %263 = vmatprep.subr.mxu0 0.0
      %264 = vmatpush1.msra.mxu0 0.0
      %265 = vmatprep.subr.mxu0 0.0
      %266 = vmatpush1.msra.mxu0 0.0
      %267 = vmatprep.subr.mxu0 0.0
      %268 = vmatpush1.msra.mxu0 0.0
      %269 = vmatprep.subr.mxu0 0.0
      %270 = vmatpush1.msra.mxu0 0.0
      %271 = vmatprep.subr.mxu0 0.0
      %272 = vmatpush1.msra.mxu0 0.0
      %273 = vmatprep.subr.mxu0 0.0
      %274 = vmatpush1.msra.mxu0 0.0
      %275 = vmatprep.subr.mxu0 0.0
      %276 = vmatpush1.msra.mxu0 0.0
      %277 = vmatprep.subr.mxu0 0.0
      %278 = vmatpush1.msra.mxu0 0.0
      %279 = vmatprep.subr.mxu0 0.0
      %280 = vmatpush1.msra.mxu0 0.0
      %281 = vmatprep.subr.mxu0 0.0
      %282 = vmatpush1.msra.mxu0 0.0
      %283 = vmatprep.subr.mxu0 0.0
      %284 = vmatpush1.msra.mxu0 0.0
      %285 = vmatprep.subr.mxu0 0.0
      %286 = vmatpush1.msra.mxu0 0.0
      %287 = vmatprep.subr.mxu0 0.0
      %288 = vmatpush1.msra.mxu0 0.0
      %289 = vmatprep.subr.mxu0 0.0
      %290 = vmatpush1.msra.mxu0 0.0
      %291 = vmatprep.subr.mxu0 0.0
      %292 = vmatpush1.msra.mxu0 0.0
      %293 = vmatprep.mubr.f32.mxu0 0.0
      %294 = vmatmul.mubr.f32.gmra.mrb[0].mxu0 %v206
      %v295 = vpop.f32.mrb[0].mxu0
      %v296 = vadd.f32 %v197, %v295
      %v297 = vpop.f32.mrb[0].mxu0
      %v298 = vadd.f32 %v201, %v297
      %299 = vmatprep.mubr.f32.mxu0 0.0
      %300 = vmatmul.mubr.f32.gmra.mrb[0].mxu0 %v209
      %v301 = vpop.f32.mrb[0].mxu0
      %v302 = vadd.f32 %v197, %v301
      %v303 = vpop.f32.mrb[0].mxu0
      %v304 = vadd.f32 %v201, %v303
      %305 = vmatprep.mubr.f32.mxu0 0.0
      %306 = vmatmul.mubr.f32.gmra.mrb[0].mxu0 %v212
      %v307 = vpop.f32.mrb[0].mxu0
      %v308 = vadd.f32 %v197, %v307
      %v309 = vpop.f32.mrb[0].mxu0
      %v310 = vadd.f32 %v201, %v309
      %311 = vmatprep.mubr.f32.mxu0 0.0
      %312 = vmatmul.mubr.f32.gmra.mrb[0].mxu0 %v215
      %v313 = vpop.f32.mrb[0].mxu0
      %v314 = vadd.f32 %v197, %v313
      %v315 = vpop.f32.mrb[0].mxu0
      %v316 = vadd.f32 %v201, %v315
      %317 = vmatprep.mubr.f32.mxu0 0.0
      %318 = vmatmul.mubr.f32.gmra.mrb[0].mxu0 %v218
      %v319 = vpop.f32.mrb[0].mxu0
      %v320 = vadd.f32 %v197, %v319
      %v321 = vpop.f32.mrb[0].mxu0
      %v322 = vadd.f32 %v201, %v321
      %323 = vmatprep.mubr.f32.mxu0 0.0
      %324 = vmatmul.mubr.f32.gmra.mrb[0].mxu0 %v221
      %v325 = vpop.f32.mrb[0].mxu0
      %v326 = vadd.f32 %v197, %v325
      %v327 = vpop.f32.mrb[0].mxu0
      %v328 = vadd.f32 %v201, %v327
      %329 = vmatprep.mubr.f32.mxu0 0.0
      %330 = vmatmul.mubr.f32.gmra.mrb[0].mxu0 %v224
      %v331 = vpop.f32.mrb[0].mxu0
      %v332 = vadd.f32 %v197, %v331
      %v333 = vpop.f32.mrb[0].mxu0
      %v334 = vadd.f32 %v201, %v333
      %335 = vmatprep.mubr.f32.mxu0 0.0
      %336 = vmatmul.mubr.f32.gmra.mrb[0].mxu0 %v227
      %v337 = vpop.f32.mrb[0].mxu0
      %v338 = vadd.f32 %v197, %v337
      %v339 = vpop.f32.mrb[0].mxu0
      %v340 = vadd.f32 %v201, %v339
      %341 = vdwg.mxu0
      %342 = vst [vmem:[%s174] sm:$0xff] %v296
      %343 = vst.msk [vmem:[%s174 + $0x8] sm:$0xff] %vm204, %v298
      %344 = vst [vmem:[%s174 + $0x10] sm:$0xff] %v302
      %345 = vst.msk [vmem:[%s174 + $0x18] sm:$0xff] %vm204, %v304
      %346 = vst [vmem:[%s174 + $0x20] sm:$0xff] %v308
      %347 = vst.msk [vmem:[%s174 + $0x28] sm:$0xff] %vm204, %v310
      %348 = vst [vmem:[%s174 + $0x30] sm:$0xff] %v314
      %349 = vst.msk [vmem:[%s174 + $0x38] sm:$0xff] %vm204, %v316
      %350 = vst [vmem:[%s174 + $0x40] sm:$0xff] %v320
      %351 = vst.msk [vmem:[%s174 + $0x48] sm:$0xff] %vm204, %v322
      %352 = vst [vmem:[%s174 + $0x50] sm:$0xff] %v326
      %353 = vst.msk [vmem:[%s174 + $0x58] sm:$0xff] %vm204, %v328
      %354 = vst [vmem:[%s174 + $0x60] sm:$0xff] %v332
      %355 = vst.msk [vmem:[%s174 + $0x68] sm:$0xff] %vm204, %v334
      %356 = vst [vmem:[%s174 + $0x70] sm:$0xff] %v338
      %357 = vst.msk [vmem:[%s174 + $0x78] sm:$0xff] %vm204, %v340
      %s358 = smul.u32 8, %s14
      %p359 = scmp.lt.s32.totalorder %s358, 31
      %s360 = scalar_select %p359, %s358, 31
      %s361 = smul.addr %s360, 2
      %s362 = smul.addr %s361, 8
      %s363 = scalar_lea.vmem %s3, %s362
      // Predicated region
      $region33: #{tpu_custom_call.1} parent=31 // pred_check
        %p364 = pneg %p100
      $region34: #{tpu_custom_call.1} parent=31 // pred_check_branch
        %366 = sbr.rel (%p364) target = $region36
      $region35: #{tpu_custom_call.1} parent=31 // pred_region
        %s367 = smul.u32 8, %s14
      $region36: #{tpu_custom_call.1} parent=31 // pred_fallthru
        _
    $region32: #{tpu_custom_call.1} parent=5 // pred_fallthru
      _
    %p368 = scmp.le.s32.totalorder 2, %s9
    // Predicated region
    $region37: #{tpu_custom_call.1} parent=5 // pred_check
      %p369 = pneg %p368
    $region38: #{tpu_custom_call.1} parent=5 // pred_check_branch
      %371 = sbr.rel (%p369) target = $region40
    $region39: #{tpu_custom_call.1} parent=5 // pred_region
      %s372 = ssub.s32 %s9, 2
      // Predicated region
      $region41: #{tpu_custom_call.1} parent=39 // pred_check
        %p373 = pneg %p106
      $region42: #{tpu_custom_call.1} parent=39 // pred_check_branch
        %375 = sbr.rel (%p373) target = $region44
      $region43: #{tpu_custom_call.1} parent=39 // pred_region
        %s376 = smul.u32 8, %s15
        %p377 = scmp.lt.s32.totalorder %s376, 31
        %s378 = scalar_select %p377, %s376, 31
        %s379 = smul.addr %s378, 2
        %s380 = smul.addr %s379, 8
        %s381 = scalar_lea.vmem %s3, %s380
      $region44: #{tpu_custom_call.1} parent=39 // pred_fallthru
        _
    $region40: #{tpu_custom_call.1} parent=5 // pred_fallthru
      _
  $region6: #{tpu_custom_call.1} parent=0 // loop_footer
    %s13 = sadd.s32 1, %s9
  $region7: #{tpu_custom_call.1} parent=0 // loop_footer_branch
    %8 = sbr.rel target = $region3
  $region8: #{tpu_custom_call.1} parent=0 // loop_exit
    _

</llo_original>
